<compile_context>
chip_gen: v5e
topology: v5e:2x2
jax: 0.10.0
libtpu: 0.0.40
codegen_flags: <defaults>
</compile_context>

<pallas_src>
import jax
import jax.numpy as jnp
import numpy as np
from jax.experimental import pallas as pl
from jax.experimental.pallas import tpu as pltpu


def _bilinear_disc_kernel(h_ref, c_ref, halo_ref, w_ref, b_ref, out_ref,
                          shift_ref):
    # h_ref, c_ref : (TN, n_h) f32
    # halo_ref     : (1, HALO, n_h) f32   rows of c preceding this tile
    # w_ref        : (n_h, n_h) f32       VMEM-resident bilinear weight
    # b_ref        : (1,) f32 in SMEM
    # out_ref      : (R, TN) f32
    # shift_ref    : (TN, n_h) f32 VMEM scratch for the shifted c tile
    R, TN = out_ref.shape
    HALO = halo_ref.shape[1]

    # hw[n, k] = sum_i h[n, i] * W[i, k] -- computed once, reused for all R rows.
    hw = jnp.dot(h_ref[...], w_ref[...], preferred_element_type=jnp.float32)
    c_blk = c_ref[...]
    halo = halo_ref[0]          # (HALO, n_h)
    bias = b_ref[0]             # scalar from SMEM

    # r = 0: positive samples, no shift.
    out_ref[0, :] = jnp.sum(c_blk * hw, axis=-1) + bias

    # r >= 1: rows shifted down by r; the first r rows come from the halo.
    for r in range(1, R):
        shift_ref[0:r, :] = halo[HALO - r:HALO, :]
        shift_ref[r:TN, :] = c_blk[0:TN - r, :]
        out_ref[r, :] = jnp.sum(shift_ref[...] * hw, axis=-1) + bias


def contextual_discriminator_forward(c, h_pl, weight, bias, negsamp_round):
    """Reproduces Contextual_Discriminator.forward.

    c, h_pl : (N, n_h)
    weight  : (n_h, n_h)   (nn.Bilinear weight[0])
    bias    : scalar
    returns : (R*N, 1) float32, R = 1 + negsamp_round
    """
    N, n_h = c.shape
    assert h_pl.shape == (N, n_h)
    assert weight.shape == (n_h, n_h)
    R = 1 + int(negsamp_round)
    assert N >= max(2, R), "need at least max(2, 1 + negsamp_round) rows"
    HALO = max(R - 1, 1)

    f32 = jnp.float32
    c_f = c.astype(f32)
    h_f = h_pl.astype(f32)
    w_f = weight.astype(f32)
    b_arr = jnp.asarray(bias, f32).reshape((1,))

    # ---- tile over N (lane axis of the output). 512 keeps the
    #      double-buffered working set well under 32 MiB on v5e/v6e/v7x. ----
    if N >= 512:
        TN = 512
        N_pad = ((N + TN - 1) // TN) * TN
    else:
        TN = N                      # single tile covering the full array
        N_pad = N
    num_tiles = N_pad // TN

    if N_pad != N:
        pad_rows = jnp.zeros((N_pad - N, n_h), f32)
        c_p = jnp.concatenate([c_f, pad_rows], axis=0)
        h_p = jnp.concatenate([h_f, pad_rows], axis=0)
    else:
        c_p, h_p = c_f, h_f

    # ---- per-tile halo rows (the <= R-1 rows of c preceding each tile;
    #      tile 0 wraps around to c[N-R : N-1]). Tiny array, no R-fold copy. --
    if R >= 2:
        halo0 = c_f[N - R:N - 1, :]                  # (R-1, n_h) == (HALO, n_h)
    else:
        halo0 = jnp.zeros((HALO, n_h), f32)          # unused dummy
    halos = [halo0]
    for i in range(1, num_tiles):
        halos.append(c_p[i * TN - HALO:i * TN, :])
    halo_arr = jnp.stack(halos, axis=0)              # (num_tiles, HALO, n_h)

    flops = 2 * N_pad * n_h * n_h + 2 * R * N_pad * n_h
    bytes_accessed = 4 * (2 * N_pad * n_h + num_tiles * HALO * n_h
                          + n_h * n_h + R * N_pad)

    scores = pl.pallas_call(
        _bilinear_disc_kernel,
        out_shape=jax.ShapeDtypeStruct((R, N_pad), f32),
        grid=(num_tiles,),
        in_specs=[
            pl.BlockSpec((TN, n_h), lambda i: (i, 0)),            # h_pl tile
            pl.BlockSpec((TN, n_h), lambda i: (i, 0)),            # c tile
            pl.BlockSpec((1, HALO, n_h), lambda i: (i, 0, 0)),    # halo rows
            pl.BlockSpec((n_h, n_h), lambda i: (0, 0)),           # W (resident)
            pl.BlockSpec((1,), lambda i: (0,),
                         memory_space=pltpu.MemorySpace.SMEM),    # bias scalar
        ],
        out_specs=pl.BlockSpec((R, TN), lambda i: (0, i)),        # lane-dense
        scratch_shapes=[pltpu.VMEM((TN, n_h), f32)],
        compiler_params=pltpu.CompilerParams(
            dimension_semantics=("parallel",),
            vmem_limit_bytes=32 * 1024 * 1024,
        ),
        cost_estimate=pl.CostEstimate(
            flops=flops, transcendentals=0, bytes_accessed=bytes_accessed),
    )(h_p, c_p, halo_arr, w_f, b_arr)

    # Row-major (R, N) == torch.cat of the R (N, 1) score blocks.
    return scores[:, :N].reshape(R * N, 1)


def _reference_forward(c, h_pl, weight, bias, negsamp_round):
    """Pure-JAX reference mirroring the PyTorch module."""
    def f_k(x1, x2):
        # nn.Bilinear(n_h, n_h, 1): y[n] = x1[n] @ W @ x2[n] + b
        return jnp.sum((x1 @ weight) * x2, axis=-1, keepdims=True) + bias

    scs = [f_k(h_pl, c)]
    c_mi = c
    for _ in range(negsamp_round):
        c_mi = jnp.concatenate([c_mi[-2:-1, :], c_mi[:-1, :]], axis=0)
        scs.append(f_k(h_pl, c_mi))
    return jnp.concatenate(scs, axis=0)


if __name__ == "__main__":
    key = jax.random.PRNGKey(0)

    def run_case(case_key, N, n_h, negsamp_round, bias_val):
        k1, k2, k3 = jax.random.split(case_key, 3)
        c = jax.random.normal(k1, (N, n_h), dtype=jnp.float32)
        h_pl = jax.random.normal(k2, (N, n_h), dtype=jnp.float32)
        # Xavier-uniform init for the bilinear weight, matching weights_init.
        limit = float(np.sqrt(6.0 / (n_h * n_h + n_h)))
        weight = jax.random.uniform(k3, (n_h, n_h), minval=-limit, maxval=limit,
                                    dtype=jnp.float32)
        bias = jnp.float32(bias_val)

        out = contextual_discriminator_forward(c, h_pl, weight, bias,
                                               negsamp_round)
        out = jax.block_until_ready(out)

        ref = _reference_forward(c, h_pl, weight, bias, negsamp_round)
        R = 1 + negsamp_round
        assert out.shape == (R * N, 1), out.shape
        np.testing.assert_allclose(np.asarray(out), np.asarray(ref),
                                   rtol=1e-4, atol=1e-4)

    k0, k1 = jax.random.split(key)
    # Small single-tile case (hidden=32, like the module's typical config).
    run_case(k0, N=8, n_h=32, negsamp_round=2, bias_val=0.0)
    # Multi-tile + padding case: N=1000 -> two 512-row tiles, pipelined grid.
    run_case(k1, N=1000, n_h=128, negsamp_round=1, bias_val=0.25)
    print("KERNEL_OK")
</pallas_src>

<mosaic_0001>
module attributes {stable_mosaic.version = 11 : i64} {
  func.func @_bilinear_disc_kernel(%arg0: i32, %arg1: memref<8x32xf32, #tpu.memory_space<vmem>>, %arg2: memref<8x32xf32, #tpu.memory_space<vmem>>, %arg3: memref<1x2x32xf32, #tpu.memory_space<vmem>>, %arg4: memref<32x32xf32, #tpu.memory_space<vmem>>, %arg5: memref<1xf32, #tpu.memory_space<smem>>, %arg6: memref<3x8xf32, #tpu.memory_space<vmem>>, %arg7: memref<8x32xf32, #tpu.memory_space<vmem>>) attributes {dimension_semantics = [#tpu.dimension_semantics<parallel>], iteration_bounds = array<i64: 1>, scalar_prefetch = 0 : i64, scratch_operands = 1 : i64, tpu.core_type = #tpu.core_type<tc>, window_params = [{transform_indices = @transform_0, window_bounds = array<i64: 8, 32>}, {transform_indices = @transform_1, window_bounds = array<i64: 8, 32>}, {transform_indices = @transform_2, window_bounds = array<i64: 1, 2, 32>}, {pipeline_mode = #tpu.pipeline_mode<synchronous>, transform_indices = @transform_3, window_bounds = array<i64: 32, 32>}, {transform_indices = @transform_4, window_bounds = array<i64: 1>}, {transform_indices = @transform_5, window_bounds = array<i64: 3, 8>}]} {
    %c0 = arith.constant 0 : index
    %c0_0 = arith.constant 0 : index
    %0 = vector.load %arg1[%c0, %c0_0] : memref<8x32xf32, #tpu.memory_space<vmem>>, vector<8x32xf32>
    %c0_1 = arith.constant 0 : index
    %c0_2 = arith.constant 0 : index
    %1 = vector.load %arg4[%c0_1, %c0_2] : memref<32x32xf32, #tpu.memory_space<vmem>>, vector<32x32xf32>
    %cst = arith.constant dense<0.000000e+00> : vector<8x32xf32>
    %2 = tpu.matmul %0, %1, %cst {dimension_numbers = #tpu.dot_dimension_numbers<[1], [0], [0], [1], [0, 0, 1, 1], [], []>} : vector<8x32xf32>, vector<32x32xf32>, vector<8x32xf32> -> vector<8x32xf32>
    %c0_3 = arith.constant 0 : index
    %c0_4 = arith.constant 0 : index
    %3 = vector.load %arg2[%c0_3, %c0_4] : memref<8x32xf32, #tpu.memory_space<vmem>>, vector<8x32xf32>
    %c0_5 = arith.constant 0 : index
    %c0_6 = arith.constant 0 : index
    %c0_7 = arith.constant 0 : index
    %4 = vector.load %arg3[%c0_5, %c0_6, %c0_7] : memref<1x2x32xf32, #tpu.memory_space<vmem>>, vector<1x2x32xf32>
    %5 = vector.shape_cast %4 : vector<1x2x32xf32> to vector<2x32xf32>
    %c0_8 = arith.constant 0 : index
    %6 = memref.load %arg5[%c0_8] : memref<1xf32, #tpu.memory_space<smem>>
    %7 = arith.mulf %3, %2 : vector<8x32xf32>
    %cst_9 = arith.constant dense<0.000000e+00> : vector<8xf32>
    %8 = vector.multi_reduction <add>, %7, %cst_9 [1] : vector<8x32xf32> to vector<8xf32>
    %9 = vector.broadcast %6 : f32 to vector<8xf32>
    %10 = arith.addf %8, %9 : vector<8xf32>
    %c0_10 = arith.constant 0 : index
    %c0_11 = arith.constant 0 : index
    %11 = vector.load %arg6[%c0_10, %c0_11] : memref<3x8xf32, #tpu.memory_space<vmem>>, vector<1x8xf32>
    %12 = vector.shape_cast %11 : vector<1x8xf32> to vector<8xf32>
    %13 = vector.shape_cast %10 : vector<8xf32> to vector<1x8xf32>
    tpu.vector_store %arg6[%c0_10, %c0_11], %13 {strides = array<i32>} : memref<3x8xf32, #tpu.memory_space<vmem>>, vector<1x8xf32>,
    %14 = vector.extract_strided_slice %5 {offsets = [1, 0], sizes = [1, 32], strides = [1, 1]} : vector<2x32xf32> to vector<1x32xf32>
    %c0_12 = arith.constant 0 : index
    %c0_13 = arith.constant 0 : index
    %15 = vector.load %arg7[%c0_12, %c0_13] : memref<8x32xf32, #tpu.memory_space<vmem>>, vector<1x32xf32>
    tpu.vector_store %arg7[%c0_12, %c0_13], %14 {strides = array<i32>} : memref<8x32xf32, #tpu.memory_space<vmem>>, vector<1x32xf32>,
    %16 = vector.extract_strided_slice %3 {offsets = [0, 0], sizes = [7, 32], strides = [1, 1]} : vector<8x32xf32> to vector<7x32xf32>
    %c1 = arith.constant 1 : index
    %c0_14 = arith.constant 0 : index
    %17 = vector.load %arg7[%c1, %c0_14] : memref<8x32xf32, #tpu.memory_space<vmem>>, vector<7x32xf32>
    tpu.vector_store %arg7[%c1, %c0_14], %16 {strides = array<i32>} : memref<8x32xf32, #tpu.memory_space<vmem>>, vector<7x32xf32>,
    %c0_15 = arith.constant 0 : index
    %c0_16 = arith.constant 0 : index
    %18 = vector.load %arg7[%c0_15, %c0_16] : memref<8x32xf32, #tpu.memory_space<vmem>>, vector<8x32xf32>
    %19 = arith.mulf %18, %2 : vector<8x32xf32>
    %cst_17 = arith.constant dense<0.000000e+00> : vector<8xf32>
    %20 = vector.multi_reduction <add>, %19, %cst_17 [1] : vector<8x32xf32> to vector<8xf32>
    %21 = vector.broadcast %6 : f32 to vector<8xf32>
    %22 = arith.addf %20, %21 : vector<8xf32>
    %c1_18 = arith.constant 1 : index
    %c0_19 = arith.constant 0 : index
    %23 = vector.load %arg6[%c1_18, %c0_19] : memref<3x8xf32, #tpu.memory_space<vmem>>, vector<1x8xf32>
    %24 = vector.shape_cast %23 : vector<1x8xf32> to vector<8xf32>
    %25 = vector.shape_cast %22 : vector<8xf32> to vector<1x8xf32>
    tpu.vector_store %arg6[%c1_18, %c0_19], %25 {strides = array<i32>} : memref<3x8xf32, #tpu.memory_space<vmem>>, vector<1x8xf32>,
    %c0_20 = arith.constant 0 : index
    %c0_21 = arith.constant 0 : index
    %26 = vector.load %arg7[%c0_20, %c0_21] : memref<8x32xf32, #tpu.memory_space<vmem>>, vector<2x32xf32>
    tpu.vector_store %arg7[%c0_20, %c0_21], %5 {strides = array<i32>} : memref<8x32xf32, #tpu.memory_space<vmem>>, vector<2x32xf32>,
    %27 = vector.extract_strided_slice %3 {offsets = [0, 0], sizes = [6, 32], strides = [1, 1]} : vector<8x32xf32> to vector<6x32xf32>
    %c2 = arith.constant 2 : index
    %c0_22 = arith.constant 0 : index
    %28 = vector.load %arg7[%c2, %c0_22] : memref<8x32xf32, #tpu.memory_space<vmem>>, vector<6x32xf32>
    tpu.vector_store %arg7[%c2, %c0_22], %27 {strides = array<i32>} : memref<8x32xf32, #tpu.memory_space<vmem>>, vector<6x32xf32>,
    %c0_23 = arith.constant 0 : index
    %c0_24 = arith.constant 0 : index
    %29 = vector.load %arg7[%c0_23, %c0_24] : memref<8x32xf32, #tpu.memory_space<vmem>>, vector<8x32xf32>
    %30 = arith.mulf %29, %2 : vector<8x32xf32>
    %cst_25 = arith.constant dense<0.000000e+00> : vector<8xf32>
    %31 = vector.multi_reduction <add>, %30, %cst_25 [1] : vector<8x32xf32> to vector<8xf32>
    %32 = vector.broadcast %6 : f32 to vector<8xf32>
    %33 = arith.addf %31, %32 : vector<8xf32>
    %c2_26 = arith.constant 2 : index
    %c0_27 = arith.constant 0 : index
    %34 = vector.load %arg6[%c2_26, %c0_27] : memref<3x8xf32, #tpu.memory_space<vmem>>, vector<1x8xf32>
    %35 = vector.shape_cast %34 : vector<1x8xf32> to vector<8xf32>
    %36 = vector.shape_cast %33 : vector<8xf32> to vector<1x8xf32>
    tpu.vector_store %arg6[%c2_26, %c0_27], %36 {strides = array<i32>} : memref<3x8xf32, #tpu.memory_space<vmem>>, vector<1x8xf32>,
    return
  }
  func.func @transform_0(%arg0: i32) -> (i32, i32) {
    %c0_i32 = arith.constant 0 : i32
    %c0_i32_0 = arith.constant 0 : i32
    return %arg0, %c0_i32 : i32, i32
  }
  func.func @transform_1(%arg0: i32) -> (i32, i32) {
    %c0_i32 = arith.constant 0 : i32
    %c0_i32_0 = arith.constant 0 : i32
    return %arg0, %c0_i32 : i32, i32
  }
  func.func @transform_2(%arg0: i32) -> (i32, i32, i32) {
    %c0_i32 = arith.constant 0 : i32
    %c0_i32_0 = arith.constant 0 : i32
    %c0_i32_1 = arith.constant 0 : i32
    return %arg0, %c0_i32, %c0_i32_0 : i32, i32, i32
  }
  func.func @transform_3(%arg0: i32) -> (i32, i32) {
    %c0_i32 = arith.constant 0 : i32
    %c0_i32_0 = arith.constant 0 : i32
    %c0_i32_1 = arith.constant 0 : i32
    return %c0_i32, %c0_i32_0 : i32, i32
  }
  func.func @transform_4(%arg0: i32) -> i32 {
    %c0_i32 = arith.constant 0 : i32
    %c0_i32_0 = arith.constant 0 : i32
    return %c0_i32 : i32
  }
  func.func @transform_5(%arg0: i32) -> (i32, i32) {
    %c0_i32 = arith.constant 0 : i32
    %c0_i32_0 = arith.constant 0 : i32
    return %c0_i32, %arg0 : i32, i32
  }
}

</mosaic_0001>

<llo_original>
// kernel: tpu_custom_call.1
$region0: #{tpu_custom_call.1}
  #allocation0 [shape = 'u32[]', space=smem, size = 0x4, offset = 0x4, fixed_abs, tag = 'smem constant byte address 0x4 - core index']
  #allocation1 [shape = 'u32[72,128]{1,0:T(1,128)}', space=vmem, size = 0x9000, scoped, tag = 'internal scratch']
  #allocation2 [shape = 'f32[8,32]{1,0:T(8,128)}', space=vmem, size = 0x1000, scoped, tag = 'scratch operand']
  #allocation3 [shape = 'f32[1]{0:T(128)S(6)}', space=smem, size = 0x200, scoped, tag = 'scoped memory for tpu_custom_call.1']
  %s0 = inlined_call_operand.hbm [shape: f32[8,32], index: 0, kind: input, shape index: {}]
  %s1 = inlined_call_operand.hbm [shape: f32[8,32], index: 1, kind: input, shape index: {}]
  %s2 = inlined_call_operand.vmem [shape: f32[1,2,32], index: 2, kind: input, shape index: {}]
  %s3 = inlined_call_operand.hbm [shape: f32[32,32], index: 3, kind: input, shape index: {}]
  %s4 = inlined_call_operand.<no memory space> [shape: f32[1], index: 4, kind: input, shape index: {}]
  %s5 = inlined_call_operand.hbm [shape: f32[3,8], index: 5, kind: output, shape index: {}]
  %s6 = sld [smem:[#allocation0]]
  $region42: #{tpu_custom_call.1} parent=0
    _
  %s8 = ssub.s32 1, %s6
  %s9 = scalar_select 0, %s8, %s6
  %10 = sst [smem:[#allocation3]] %s4
  $region1: #{tpu_custom_call.1} parent=0
    #allocation4 [shape = 'u8[4096]{0}', space=vmem, size = 0x1000, scoped, tag = 'input window, operand 0, single buffered']
    #allocation5 [shape = 's32[1]{0}', space=sflag, size = 0x4, scoped, tag = 'scoped memory for tpu_custom_call.1']
    #allocation6 [shape = 's32[1]{0}', space=sflag, size = 0x4, scoped, tag = 'scoped memory for tpu_custom_call.1']
    #allocation7 [shape = 'u8[4096]{0}', space=vmem, size = 0x1000, scoped, tag = 'input window, operand 1, single buffered']
    #allocation8 [shape = 's32[1]{0}', space=sflag, size = 0x4, scoped, tag = 'scoped memory for tpu_custom_call.1']
    #allocation9 [shape = 'u8[16384]{0}', space=vmem, size = 0x4000, scoped, tag = 'input window, operand 3, single buffered']
    #allocation10 [shape = 'u8[2048]{0}', space=vmem, size = 0x800, scoped, tag = 'output window, operand 0, single buffered']
    %11 = vsyncpa [#allocation5], 0
    %12 = vsyncpa [#allocation8], 0
    %13 = vsyncpa [#allocation6], 0
    // Predicated region
    $region2: #{tpu_custom_call.1} parent=1 // pred_check
      _
    $region3: #{tpu_custom_call.1} parent=1 // pred_check_branch
      %15 = sbr.rel (0) target = $region5
    $region4: #{tpu_custom_call.1} parent=1 // pred_region
      %17 = vsyncadd [#allocation5], 0
      %s19 = sshll.u32 %s0, 4
      %s20 = int_to_ptr.hbm [resolvable:$true] %s19
      %s21 = sshll.u32 [#allocation4], 4
      %s22 = int_to_ptr.vmem [resolvable:$true] %s21
      %24 = dma.hbm_to_vmem [thread:$0]  %s20, 128, %s22, [#allocation5]
    $region5: #{tpu_custom_call.1} parent=1 // pred_fallthru
      _
    // Predicated region
    $region6: #{tpu_custom_call.1} parent=1 // pred_check
      _
    $region7: #{tpu_custom_call.1} parent=1 // pred_check_branch
      %26 = sbr.rel (0) target = $region9
    $region8: #{tpu_custom_call.1} parent=1 // pred_region
      %28 = vsyncadd [#allocation8], 0
      %s30 = sshll.u32 %s1, 4
      %s31 = int_to_ptr.hbm [resolvable:$true] %s30
      %s32 = sshll.u32 [#allocation7], 4
      %s33 = int_to_ptr.vmem [resolvable:$true] %s32
      %35 = dma.hbm_to_vmem [thread:$0]  %s31, 128, %s33, [#allocation8]
    $region9: #{tpu_custom_call.1} parent=1 // pred_fallthru
      _
    // Predicated region
    $region10: #{tpu_custom_call.1} parent=1 // pred_check
      _
    $region11: #{tpu_custom_call.1} parent=1 // pred_check_branch
      %37 = sbr.rel (0) target = $region13
    $region12: #{tpu_custom_call.1} parent=1 // pred_region
      _
    $region13: #{tpu_custom_call.1} parent=1 // pred_fallthru
      _
    // Predicated region
    $region14: #{tpu_custom_call.1} parent=1 // pred_check
      _
    $region15: #{tpu_custom_call.1} parent=1 // pred_check_branch
      %39 = sbr.rel (0) target = $region17
    $region16: #{tpu_custom_call.1} parent=1 // pred_region
      %41 = vsyncadd [#allocation8], 0
      %s42 = sshll.u32 %s3, 4
      %s43 = int_to_ptr.hbm [resolvable:$true] %s42
      %s44 = sshll.u32 [#allocation9], 4
      %s45 = int_to_ptr.vmem [resolvable:$true] %s44
      %50 = dma.hbm_to_vmem [thread:$0]  %s43, 512, %s45, [#allocation8], 128, 128, 8
    $region17: #{tpu_custom_call.1} parent=1 // pred_fallthru
      _
    // Predicated region
    $region18: #{tpu_custom_call.1} parent=1 // pred_check
      _
    $region19: #{tpu_custom_call.1} parent=1 // pred_check_branch
      %52 = sbr.rel (0) target = $region21
    $region20: #{tpu_custom_call.1} parent=1 // pred_region
      _
    $region21: #{tpu_custom_call.1} parent=1 // pred_fallthru
      _
    // Predicated region
    $region22: #{tpu_custom_call.1} parent=1 // pred_check
      _
    $region23: #{tpu_custom_call.1} parent=1 // pred_check_branch
      %54 = sbr.rel (0) target = $region25
    $region24: #{tpu_custom_call.1} parent=1 // pred_region
      %56 = dma.done [#allocation5], 128
    $region25: #{tpu_custom_call.1} parent=1 // pred_fallthru
      _
    // Predicated region
    $region26: #{tpu_custom_call.1} parent=1 // pred_check
      _
    $region27: #{tpu_custom_call.1} parent=1 // pred_check_branch
      %58 = sbr.rel (0) target = $region29
    $region28: #{tpu_custom_call.1} parent=1 // pred_region
      %60 = dma.done [#allocation8], 128
    $region29: #{tpu_custom_call.1} parent=1 // pred_fallthru
      _
    // Predicated region
    $region30: #{tpu_custom_call.1} parent=1 // pred_check
      _
    $region31: #{tpu_custom_call.1} parent=1 // pred_check_branch
      %62 = sbr.rel (0) target = $region33
    $region32: #{tpu_custom_call.1} parent=1 // pred_region
      %64 = dma.done [#allocation8], 512
    $region33: #{tpu_custom_call.1} parent=1 // pred_fallthru
      _
    %v65 = vld [vmem:[#allocation4] sm:$0xff]
    %v66 = vld [vmem:[#allocation9] sm:$0xff]
    %v67 = vld [vmem:[#allocation9 + $0x8] sm:$0xff]
    %v68 = vld [vmem:[#allocation9 + $0x10] sm:$0xff]
    %v69 = vld [vmem:[#allocation9 + $0x18] sm:$0xff]
    %vm70 = vcmask 261120
    %v72 = vsel %vm70, %v65, 0
    %74 = vmatpush.msra.mxu0 0.0
    %75 = vmatpush.msra.mxu0 0.0
    %76 = vmatpush.msra.mxu0 0.0
    %77 = vmatpush.msra.mxu0 0.0
    %78 = vmatpush.msra.mxu0 0.0
    %79 = vmatpush.msra.mxu0 0.0
    %80 = vmatpush.msra.mxu0 0.0
    %81 = vmatpush.msra.mxu0 0.0
    %82 = vmatpush.msra.mxu0 0.0
    %83 = vmatpush.msra.mxu0 0.0
    %84 = vmatpush.msra.mxu0 0.0
    %85 = vmatpush.msra.mxu0 0.0
    %86 = vmatpush.msra.mxu0 %v69
    %87 = vmatpush.msra.mxu0 %v68
    %88 = vmatpush.msra.mxu0 %v67
    %89 = vmatpush.msra.mxu0 %v66
    %90 = vmatmul.f32.gmra.mxu0 %v72
    %v91 = vpop.f32.mrf.mxu0
    %v92 = vadd.f32 0.0, %v91
    %93 = vdwg.mxu0
    %v94 = vld [vmem:[#allocation7] sm:$0xff]
    %v95 = vld [vmem:[%s2] sm:$0x3]
    %s96 = sld [smem:[#allocation3]]
    %v97 = vmul.f32 %v94, %v92
    %v98 = vsel %vm70, %v97, 0.0
    %99 = vadd.xlane.f32.xlu0 %v98
    %v100 = vpop.xlane.xlu0 %99
    %v101 = vstv %s96
    %v102 = vadd.f32 %v100, %v101
    %v104 = vlaneseq
    %v105 = vand.u32 %v104, 127
    %v106 = vperm.slane %v102, %v105
    %vm108 = vcmask 57344
    %109 = vst.msk [vmem:[#allocation10] sm:$0x1] %vm108, %v106
    %vm110 = vcmask 254977
    %111 = vst.msk [vmem:[#allocation2 - $0x1] sm:$0x2] %vm110, %v95
    %vm112 = vcmask 260096
    %113 = vst.msk [vmem:[#allocation2 + $0x1] sm:$0x7f] %vm112, %v94
    %v114 = vld [vmem:[#allocation2] sm:$0xff]
    %v115 = vmul.f32 %v114, %v92
    %v116 = vsel %vm70, %v115, 0.0
    %117 = vadd.xlane.f32.xlu0 %v116
    %v118 = vpop.xlane.xlu0 %117
    %v119 = vadd.f32 %v118, %v101
    %v121 = vperm.slane %v119, %v105
    %123 = vst.msk [vmem:[#allocation10 + $0x1] sm:$0x1] %vm108, %v121
    %vm124 = vcmask 254976
    %125 = vst.msk [vmem:[#allocation2] sm:$0x3] %vm124, %v95
    %vm126 = vcmask 259072
    %127 = vst.msk [vmem:[#allocation2 + $0x2] sm:$0x3f] %vm126, %v94
    %v128 = vld [vmem:[#allocation2] sm:$0xff]
    %v129 = vmul.f32 %v128, %v92
    %v130 = vsel %vm70, %v129, 0.0
    %131 = vadd.xlane.f32.xlu0 %v130
    %v132 = vpop.xlane.xlu0 %131
    %v133 = vadd.f32 %v132, %v101
    %v135 = vperm.slane %v133, %v105
    %137 = vst.msk [vmem:[#allocation10 + $0x2] sm:$0x1] %vm108, %v135
    // Predicated region
    $region34: #{tpu_custom_call.1} parent=1 // pred_check
      _
    $region35: #{tpu_custom_call.1} parent=1 // pred_check_branch
      %139 = sbr.rel (0) target = $region37
    $region36: #{tpu_custom_call.1} parent=1 // pred_region
      %141 = vsyncadd [#allocation6], 0
      %s143 = sshll.u32 [#allocation10], 4
      %s144 = int_to_ptr.vmem [resolvable:$true] %s143
      %s145 = sshll.u32 %s5, 4
      %s146 = int_to_ptr.hbm [resolvable:$true] %s145
      %148 = dma.vmem_to_hbm [thread:$0]  %s144, 64, %s146, [#allocation6]
    $region37: #{tpu_custom_call.1} parent=1 // pred_fallthru
      _
    // Predicated region
    $region38: #{tpu_custom_call.1} parent=1 // pred_check
      _
    $region39: #{tpu_custom_call.1} parent=1 // pred_check_branch
      %150 = sbr.rel (0) target = $region41
    $region40: #{tpu_custom_call.1} parent=1 // pred_region
      %152 = dma.done [#allocation6], 64
    $region41: #{tpu_custom_call.1} parent=1 // pred_fallthru
      _
    %153 = vsyncpa [#allocation5], 1
    %154 = vsyncpa [#allocation8], 1
    %155 = vsyncpa [#allocation6], 1

</llo_original>
